<compile_context>
chip_gen: v6e
topology: v6e:2x2x1
jax: 0.10.0
libtpu: 0.0.40
codegen_flags: <defaults>
</compile_context>

<pallas_src>
import functools
import math

import jax
import jax.numpy as jnp
from jax import lax
from jax.experimental import pallas as pl
from jax.experimental.pallas import tpu as pltpu

LANES = 128
SUBLANES = 8


def _round_up(x, m):
    return ((x + m - 1) // m) * m


def _chip_config():
    """(tm_target, shards, vmem_limit_bytes) tuned per TPU generation."""
    try:
        kind = jax.devices()[0].device_kind.lower()
    except Exception:
        kind = ""
    if "v7" in kind:
        # 2 TensorCores / 64 MiB VMEM: medium tiles, shard across both cores.
        return 4096, 2, 48 * 1024 * 1024
    if any(v in kind for v in ("v6", "v5", "v4")):
        # Single TensorCore / 128 MiB VMEM: biggest tiles, no shard split.
        return 8192, 1, 64 * 1024 * 1024
    # Unknown / older chips: conservative tile, default VMEM limit.
    return 2048, 1, None


def _bce_mean_kernel(x_ref, t_ref, loss_ref, psum_ref, *, alpha, rows, tm,
                     acc_rows, mask_threshold, needs_mask):
    """Elementwise BCE-with-logits (reduction='none') + vector partial sums."""
    s = pl.program_id(0)             # shard (second TensorCore on v7x)
    i = pl.program_id(1)             # sequential step within the shard
    b = s * pl.num_programs(1) + i   # logical (unclamped) block index

    @pl.when(i == 0)
    def _():
        psum_ref[...] = jnp.zeros_like(psum_ref)

    x = x_ref[...].astype(jnp.float32)
    t = t_ref[...].astype(jnp.float32)
    # Numerically-stable BCEWithLogits: max(x, 0) - x*t + log1p(exp(-|x|)).
    loss = alpha * (jnp.maximum(x, 0.0) - x * t
                    + jnp.log1p(jnp.exp(-jnp.abs(x))))
    loss_ref[...] = loss.astype(loss_ref.dtype)

    # Fold (tm, 128) -> (acc_rows, 128) partial sums: pure VPU adds with
    # acc_rows/8 independent vreg chains; the tiny cross-lane reduce happens
    # once in the wrapper.
    def fold(v):
        return jnp.sum(v.reshape(tm // acc_rows, acc_rows, LANES), axis=0)

    if needs_mask:   # static: traced in only when a ragged/duplicate block exists
        @pl.when(b >= mask_threshold)
        def _():
            # Only the last (ragged) block and out-of-range duplicate steps pay
            # for the iota + select.  Row-level compare: no int32 overflow risk
            # for any realistic tensor (rows = total/128 < 2**31).
            row_ids = b * tm + lax.broadcasted_iota(jnp.int32, (tm, LANES), 0)
            psum_ref[...] += fold(jnp.where(row_ids < rows, loss, 0.0))

        @pl.when(b < mask_threshold)
        def _():
            psum_ref[...] += fold(loss)
    else:
        psum_ref[...] += fold(loss)


def bce_dice_loss(inputs, targets, *, alpha=1.0, beta=1.0, classes=4):
    """Pallas implementation of BCEDiceLoss.forward. Returns (loss_1, mean)."""
    del beta, classes  # DiceLoss member is unused in the reference forward().
    assert inputs.shape == targets.shape, \
        "'input' and 'target' must have the same shape"

    orig_shape = inputs.shape
    out_dtype = inputs.dtype
    total = inputs.size

    tm_target, shards, vmem_limit = _chip_config()

    # Lay the tensor out as (rows, 128) lane-dense rows.  Only the (rare)
    # non-128-aligned case needs a pad; 128-aligned tensors are zero-copy.
    rows = pl.cdiv(total, LANES)
    pad = rows * LANES - total            # 0..127 zero elements
    # TODO(synk): non-128-aligned totals still pay one jnp.pad copy per input
    # and one output slice; a fully ragged 1-D-block path would remove them.
    x_flat = inputs.reshape(-1)
    t_flat = targets.reshape(-1)
    if pad:
        x_flat = jnp.pad(x_flat, (0, pad))
        t_flat = jnp.pad(t_flat, (0, pad))
    x2 = x_flat.reshape(rows, LANES)
    t2 = t_flat.reshape(rows, LANES)

    # Tile selection.  Row tiles are a multiple of the dtype's packed-sublane
    # count (8 for f32, 16 for bf16, 32 for int8/fp8).
    sub_mult = SUBLANES * max(1, 4 // jnp.dtype(out_dtype).itemsize)
    shards = max(1, min(shards, rows // sub_mult))
    tm = min(tm_target, _round_up(pl.cdiv(rows, shards), sub_mult))
    num_blocks = pl.cdiv(rows, tm)
    shards = min(shards, num_blocks)
    steps = pl.cdiv(num_blocks, shards)

    ragged = (rows % tm) != 0                 # last block has OOB garbage rows
    has_dups = shards * steps > num_blocks    # grid steps past the last block
    needs_mask = ragged or has_dups
    mask_threshold = num_blocks - 1 if ragged else num_blocks

    # Widest accumulator whose row count divides tm (more independent chains).
    acc_rows = next(a for a in (32, 16, 8) if tm % a == 0)

    if has_dups:
        def blk_map(s, i):
            # Clamp so grid steps past the last real block just re-visit it
            # (their psum contribution is masked to zero inside the kernel).
            return (jnp.minimum(s * steps + i, num_blocks - 1), 0)
    else:
        def blk_map(s, i):
            return (s * steps + i, 0)

    cp_kwargs = dict(dimension_semantics=("parallel", "arbitrary"))
    if vmem_limit is not None:
        cp_kwargs["vmem_limit_bytes"] = vmem_limit

    loss2, psum = pl.pallas_call(
        functools.partial(
            _bce_mean_kernel, alpha=float(alpha), rows=rows, tm=tm,
            acc_rows=acc_rows, mask_threshold=mask_threshold,
            needs_mask=needs_mask),
        out_shape=(
            jax.ShapeDtypeStruct((rows, LANES), out_dtype),
            jax.ShapeDtypeStruct((shards * acc_rows, LANES), jnp.float32),
        ),
        grid_spec=pltpu.PrefetchScalarGridSpec(
            num_scalar_prefetch=0,
            grid=(shards, steps),
            in_specs=[
                pl.BlockSpec((tm, LANES), blk_map),
                pl.BlockSpec((tm, LANES), blk_map),
            ],
            out_specs=(
                pl.BlockSpec((tm, LANES), blk_map),
                # Per-shard grid-resident partial-sum accumulator.
                pl.BlockSpec((acc_rows, LANES), lambda s, i: (s, 0)),
            ),
        ),
        compiler_params=pltpu.CompilerParams(**cp_kwargs),
    )(x2, t2)

    if pad:
        loss_1 = loss2.reshape(-1)[:total].reshape(orig_shape)
    else:
        loss_1 = loss2.reshape(orig_shape)

    loss_sum = jnp.sum(psum)
    if pad:
        # Padded inputs are exactly zero, so each contributes alpha*ln2 to the
        # sum; correct analytically instead of masking every grid step.
        loss_sum = loss_sum - jnp.float32(pad * float(alpha) * math.log(2.0))
    mean = (loss_sum / jnp.float32(total)).astype(out_dtype)
    return loss_1, mean


if __name__ == "__main__":
    key = jax.random.PRNGKey(0)
    k1, k2, k3, k4 = jax.random.split(key, 4)

    def reference(logits, target, alpha=1.0):
        l = alpha * (jnp.maximum(logits, 0.0) - logits * target
                     + jnp.log1p(jnp.exp(-jnp.abs(logits))))
        return l, l.mean()

    # Case 1: small NCDHW segmentation shape (N, C, D, H, W), classes=4.
    # 128-aligned total -> zero-copy (no pad / no slice) path.
    N, C, D, H, W = 2, 4, 8, 16, 16
    logits = jax.random.normal(k1, (N, C, D, H, W), dtype=jnp.float32)
    target = jax.random.bernoulli(k2, p=0.5, shape=(N, C, D, H, W)).astype(jnp.float32)
    loss_1, mean = bce_dice_loss(logits, target, alpha=1.0, beta=1.0, classes=C)
    loss_1 = jax.block_until_ready(loss_1)
    mean = jax.block_until_ready(mean)
    ref_l, ref_m = reference(logits, target, alpha=1.0)
    assert jnp.allclose(loss_1, ref_l, atol=1e-5, rtol=1e-5)
    assert jnp.allclose(mean, ref_m, atol=1e-5, rtol=1e-5)

    # Case 2: awkward (non-multiple-of-128) shape, exercises the minimal-pad
    # path, the ragged last block mask, and the analytic alpha*ln2 correction.
    shape2 = (2, 4, 7, 15, 9)
    logits2 = jax.random.normal(k3, shape2, dtype=jnp.float32)
    target2 = jax.random.bernoulli(k4, p=0.5, shape=shape2).astype(jnp.float32)
    loss_2, mean2 = bce_dice_loss(logits2, target2, alpha=0.5)
    loss_2 = jax.block_until_ready(loss_2)
    mean2 = jax.block_until_ready(mean2)
    ref_l2, ref_m2 = reference(logits2, target2, alpha=0.5)
    assert jnp.allclose(loss_2, ref_l2, atol=1e-5, rtol=1e-5)
    assert jnp.allclose(mean2, ref_m2, atol=1e-5, rtol=1e-5)

    print("KERNEL_OK")
</pallas_src>

<mosaic_0001>
module attributes {stable_mosaic.version = 11 : i64} {
  func.func @_bce_mean_kernel(%arg0: i32, %arg1: i32, %arg2: memref<128x128xf32, #tpu.memory_space<vmem>>, %arg3: memref<128x128xf32, #tpu.memory_space<vmem>>, %arg4: memref<128x128xf32, #tpu.memory_space<vmem>>, %arg5: memref<32x128xf32, #tpu.memory_space<vmem>>) attributes {dimension_semantics = [#tpu.dimension_semantics<parallel>, #tpu.dimension_semantics<arbitrary>], iteration_bounds = array<i64: 1, 1>, scalar_prefetch = 0 : i64, scratch_operands = 0 : i64, tpu.core_type = #tpu.core_type<tc>, window_params = [{transform_indices = @transform_0, window_bounds = array<i64: 128, 128>}, {transform_indices = @transform_1, window_bounds = array<i64: 128, 128>}, {transform_indices = @transform_2, window_bounds = array<i64: 128, 128>}, {transform_indices = @transform_3, window_bounds = array<i64: 32, 128>}]} {
    %c0_i32 = arith.constant 0 : i32
    %0 = arith.cmpi eq, %arg1, %c0_i32 : i32
    %1 = arith.extui %0 : i1 to i32
    %c0_i32_0 = arith.constant 0 : i32
    %2 = arith.cmpi ne, %1, %c0_i32_0 : i32
    scf.if %2 {
      %cst_13 = arith.constant 0.000000e+00 : f32
      %23 = vector.broadcast %cst_13 : f32 to vector<32x128xf32>
      %c0_14 = arith.constant 0 : index
      %c0_15 = arith.constant 0 : index
      %24 = vector.load %arg5[%c0_14, %c0_15] : memref<32x128xf32, #tpu.memory_space<vmem>>, vector<32x128xf32>
      tpu.vector_store %arg5[%c0_14, %c0_15], %23 {strides = array<i32>} : memref<32x128xf32, #tpu.memory_space<vmem>>, vector<32x128xf32>,
    } else {
    }
    %c0 = arith.constant 0 : index
    %c0_1 = arith.constant 0 : index
    %3 = vector.load %arg2[%c0, %c0_1] : memref<128x128xf32, #tpu.memory_space<vmem>>, vector<128x128xf32>
    %c0_2 = arith.constant 0 : index
    %c0_3 = arith.constant 0 : index
    %4 = vector.load %arg3[%c0_2, %c0_3] : memref<128x128xf32, #tpu.memory_space<vmem>>, vector<128x128xf32>
    %cst = arith.constant 0.000000e+00 : f32
    %5 = vector.broadcast %cst : f32 to vector<128x128xf32>
    %6 = arith.maximumf %3, %5 : vector<128x128xf32>
    %7 = arith.mulf %3, %4 : vector<128x128xf32>
    %8 = arith.subf %6, %7 : vector<128x128xf32>
    %9 = math.absf %3 : vector<128x128xf32>
    %cst_4 = arith.constant 0.000000e+00 : f32
    %10 = vector.broadcast %cst_4 : f32 to vector<128x128xf32>
    %11 = arith.subf %10, %9 : vector<128x128xf32>
    %12 = math.exp %11 : vector<128x128xf32>
    %13 = math.log1p %12 : vector<128x128xf32>
    %14 = arith.addf %8, %13 : vector<128x128xf32>
    %cst_5 = arith.constant 1.000000e+00 : f32
    %15 = vector.broadcast %cst_5 : f32 to vector<128x128xf32>
    %16 = arith.mulf %15, %14 : vector<128x128xf32>
    %c0_6 = arith.constant 0 : index
    %c0_7 = arith.constant 0 : index
    %17 = vector.load %arg4[%c0_6, %c0_7] : memref<128x128xf32, #tpu.memory_space<vmem>>, vector<128x128xf32>
    tpu.vector_store %arg4[%c0_6, %c0_7], %16 {strides = array<i32>} : memref<128x128xf32, #tpu.memory_space<vmem>>, vector<128x128xf32>,
    %c0_8 = arith.constant 0 : index
    %c0_9 = arith.constant 0 : index
    %18 = vector.load %arg5[%c0_8, %c0_9] : memref<32x128xf32, #tpu.memory_space<vmem>>, vector<32x128xf32>
    %19 = vector.shape_cast %16 : vector<128x128xf32> to vector<4x32x128xf32>
    %cst_10 = arith.constant dense<0.000000e+00> : vector<32x128xf32>
    %20 = vector.multi_reduction <add>, %19, %cst_10 [0] : vector<4x32x128xf32> to vector<32x128xf32>
    %21 = arith.addf %18, %20 : vector<32x128xf32>
    %c0_11 = arith.constant 0 : index
    %c0_12 = arith.constant 0 : index
    %22 = vector.load %arg5[%c0_11, %c0_12] : memref<32x128xf32, #tpu.memory_space<vmem>>, vector<32x128xf32>
    tpu.vector_store %arg5[%c0_11, %c0_12], %21 {strides = array<i32>} : memref<32x128xf32, #tpu.memory_space<vmem>>, vector<32x128xf32>,
    return
  }
  func.func @transform_0(%arg0: i32, %arg1: i32) -> (i32, i32) {
    %c1_i32 = arith.constant 1 : i32
    %0 = arith.muli %arg0, %c1_i32 : i32
    %1 = arith.addi %0, %arg1 : i32
    %c0_i32 = arith.constant 0 : i32
    %c0_i32_0 = arith.constant 0 : i32
    return %1, %c0_i32 : i32, i32
  }
  func.func @transform_1(%arg0: i32, %arg1: i32) -> (i32, i32) {
    %c1_i32 = arith.constant 1 : i32
    %0 = arith.muli %arg0, %c1_i32 : i32
    %1 = arith.addi %0, %arg1 : i32
    %c0_i32 = arith.constant 0 : i32
    %c0_i32_0 = arith.constant 0 : i32
    return %1, %c0_i32 : i32, i32
  }
  func.func @transform_2(%arg0: i32, %arg1: i32) -> (i32, i32) {
    %c1_i32 = arith.constant 1 : i32
    %0 = arith.muli %arg0, %c1_i32 : i32
    %1 = arith.addi %0, %arg1 : i32
    %c0_i32 = arith.constant 0 : i32
    %c0_i32_0 = arith.constant 0 : i32
    return %1, %c0_i32 : i32, i32
  }
  func.func @transform_3(%arg0: i32, %arg1: i32) -> (i32, i32) {
    %c0_i32 = arith.constant 0 : i32
    %c0_i32_0 = arith.constant 0 : i32
    return %arg0, %c0_i32 : i32, i32
  }
}

</mosaic_0001>

<llo_original>
// kernel: tpu_custom_call.1
$region0: #{tpu_custom_call.1}
  #allocation0 [shape = 'u32[]', space=smem, size = 0x4, offset = 0x4, fixed_abs, tag = 'smem constant byte address 0x4 - core index']
  #allocation1 [shape = 'u32[144,128]{1,0:T(1,128)}', space=vmem, size = 0x12000, scoped, tag = 'internal scratch']
  %s0 = inlined_call_operand.hbm [shape: f32[128,128], index: 0, kind: input, shape index: {}]
  %s1 = inlined_call_operand.hbm [shape: f32[128,128], index: 1, kind: input, shape index: {}]
  %s2 = inlined_call_operand.hbm [shape: f32[128,128], index: 2, kind: output, shape index: {0}]
  %s3 = inlined_call_operand.hbm [shape: f32[32,128], index: 3, kind: output, shape index: {1}]
  %4 = xla_tuple %s2, %s3
  %s5 = sld [smem:[#allocation0]]
  $region38: #{tpu_custom_call.1} parent=0
    _
  %s7 = ssub.s32 1, %s5
  %s8 = scalar_select 0, %s7, %s5
  $region1: #{tpu_custom_call.1} parent=0
    #allocation2 [shape = 'u8[65536]{0}', space=vmem, size = 0x10000, scoped, tag = 'input window, operand 0, single buffered']
    #allocation3 [shape = 's32[1]{0}', space=sflag, size = 0x4, scoped, tag = 'scoped memory for tpu_custom_call.1']
    #allocation4 [shape = 's32[1]{0}', space=sflag, size = 0x4, scoped, tag = 'scoped memory for tpu_custom_call.1']
    #allocation5 [shape = 'u8[65536]{0}', space=vmem, size = 0x10000, scoped, tag = 'input window, operand 1, single buffered']
    #allocation6 [shape = 's32[1]{0}', space=sflag, size = 0x4, scoped, tag = 'scoped memory for tpu_custom_call.1']
    #allocation7 [shape = 'u8[65536]{0}', space=vmem, size = 0x10000, scoped, tag = 'output window, operand 0, single buffered']
    #allocation8 [shape = 'u8[16384]{0}', space=vmem, size = 0x4000, scoped, tag = 'output window, operand 1, single buffered']
    #allocation9 [shape = 's32[1]{0}', space=sflag, size = 0x4, scoped, tag = 'scoped memory for tpu_custom_call.1']
    %9 = vsyncpa [#allocation3], 0
    %10 = vsyncpa [#allocation6], 0
    %11 = vsyncpa [#allocation4], 0
    %12 = vsyncpa [#allocation9], 0
    // Predicated region
    $region2: #{tpu_custom_call.1} parent=1 // pred_check
      _
    $region3: #{tpu_custom_call.1} parent=1 // pred_check_branch
      %14 = sbr.rel (0) target = $region5
    $region4: #{tpu_custom_call.1} parent=1 // pred_region
      %s15 = sadd.s32 0, 0
      %s16 = smul.u32 16, %s15
      %s18 = ssub.s32 2048, 2048
      %19 = vsyncadd [#allocation3], %s18
      %s20 = smul.addr %s16, 128
      %s21 = scalar_lea.hbm %s0, %s20
      %s22 = sshll.u32 [#allocation2], 4
      %s23 = int_to_ptr.vmem [resolvable:$true] %s22
      %28 = dma.hbm_to_vmem [thread:$0]  %s21, 2048, %s23, [#allocation3], 128, 128, 8
    $region5: #{tpu_custom_call.1} parent=1 // pred_fallthru
      _
    // Predicated region
    $region6: #{tpu_custom_call.1} parent=1 // pred_check
      _
    $region7: #{tpu_custom_call.1} parent=1 // pred_check_branch
      %30 = sbr.rel (0) target = $region9
    $region8: #{tpu_custom_call.1} parent=1 // pred_region
      %s31 = sadd.s32 0, 0
      %s32 = smul.u32 16, %s31
      %s34 = ssub.s32 2048, 2048
      %35 = vsyncadd [#allocation6], %s34
      %s36 = smul.addr %s32, 128
      %s37 = scalar_lea.hbm %s1, %s36
      %s38 = sshll.u32 [#allocation5], 4
      %s39 = int_to_ptr.vmem [resolvable:$true] %s38
      %44 = dma.hbm_to_vmem [thread:$0]  %s37, 2048, %s39, [#allocation6], 128, 128, 8
    $region9: #{tpu_custom_call.1} parent=1 // pred_fallthru
      _
    // Predicated region
    $region10: #{tpu_custom_call.1} parent=1 // pred_check
      _
    $region11: #{tpu_custom_call.1} parent=1 // pred_check_branch
      %46 = sbr.rel (0) target = $region13
    $region12: #{tpu_custom_call.1} parent=1 // pred_region
      %47 = dma.done [#allocation3], 2048
    $region13: #{tpu_custom_call.1} parent=1 // pred_fallthru
      _
    // Predicated region
    $region14: #{tpu_custom_call.1} parent=1 // pred_check
      _
    $region15: #{tpu_custom_call.1} parent=1 // pred_check_branch
      %49 = sbr.rel (0) target = $region17
    $region16: #{tpu_custom_call.1} parent=1 // pred_region
      %50 = dma.done [#allocation6], 2048
    $region17: #{tpu_custom_call.1} parent=1 // pred_fallthru
      _
    %s51 = sadd.s32 0, 0
    %s52 = smul.u32 16, %s51
    %s53 = sadd.s32 0, 0
    %s54 = smul.u32 16, %s53
    %s55 = sadd.s32 0, 0
    %s56 = smul.u32 16, %s55
    %p57 = scmp.eq.s32.totalorder 0, 0
    // Predicated region
    $region18: #{tpu_custom_call.1} parent=1 // pred_check
      %p58 = pneg %p57
    $region19: #{tpu_custom_call.1} parent=1 // pred_check_branch
      %60 = sbr.rel (%p58) target = $region21
    $region20: #{tpu_custom_call.1} parent=1 // pred_region
      %61 = vst [vmem:[#allocation8] sm:$0xff] 0.0
      %62 = vst [vmem:[#allocation8 + $0x8] sm:$0xff] 0.0
      %63 = vst [vmem:[#allocation8 + $0x10] sm:$0xff] 0.0
      %64 = vst [vmem:[#allocation8 + $0x18] sm:$0xff] 0.0
    $region21: #{tpu_custom_call.1} parent=1 // pred_fallthru
      _
    %v65 = vld [vmem:[#allocation2] sm:$0xff]
    %v66 = vld [vmem:[#allocation2 + $0x8] sm:$0xff]
    %v67 = vld [vmem:[#allocation2 + $0x10] sm:$0xff]
    %v68 = vld [vmem:[#allocation2 + $0x18] sm:$0xff]
    %v69 = vld [vmem:[#allocation2 + $0x20] sm:$0xff]
    %v70 = vld [vmem:[#allocation2 + $0x28] sm:$0xff]
    %v71 = vld [vmem:[#allocation2 + $0x30] sm:$0xff]
    %v72 = vld [vmem:[#allocation2 + $0x38] sm:$0xff]
    %v73 = vld [vmem:[#allocation2 + $0x40] sm:$0xff]
    %v74 = vld [vmem:[#allocation2 + $0x48] sm:$0xff]
    %v75 = vld [vmem:[#allocation2 + $0x50] sm:$0xff]
    %v76 = vld [vmem:[#allocation2 + $0x58] sm:$0xff]
    %v77 = vld [vmem:[#allocation2 + $0x60] sm:$0xff]
    %v78 = vld [vmem:[#allocation2 + $0x68] sm:$0xff]
    %v79 = vld [vmem:[#allocation2 + $0x70] sm:$0xff]
    %v80 = vld [vmem:[#allocation2 + $0x78] sm:$0xff]
    %v81 = vld [vmem:[#allocation5] sm:$0xff]
    %v82 = vld [vmem:[#allocation5 + $0x8] sm:$0xff]
    %v83 = vld [vmem:[#allocation5 + $0x10] sm:$0xff]
    %v84 = vld [vmem:[#allocation5 + $0x18] sm:$0xff]
    %v85 = vld [vmem:[#allocation5 + $0x20] sm:$0xff]
    %v86 = vld [vmem:[#allocation5 + $0x28] sm:$0xff]
    %v87 = vld [vmem:[#allocation5 + $0x30] sm:$0xff]
    %v88 = vld [vmem:[#allocation5 + $0x38] sm:$0xff]
    %v89 = vld [vmem:[#allocation5 + $0x40] sm:$0xff]
    %v90 = vld [vmem:[#allocation5 + $0x48] sm:$0xff]
    %v91 = vld [vmem:[#allocation5 + $0x50] sm:$0xff]
    %v92 = vld [vmem:[#allocation5 + $0x58] sm:$0xff]
    %v93 = vld [vmem:[#allocation5 + $0x60] sm:$0xff]
    %v94 = vld [vmem:[#allocation5 + $0x68] sm:$0xff]
    %v95 = vld [vmem:[#allocation5 + $0x70] sm:$0xff]
    %v96 = vld [vmem:[#allocation5 + $0x78] sm:$0xff]
    %v97 = vmax.f32 %v65, 0.0
    %v98 = vmax.f32 %v66, 0.0
    %v99 = vmax.f32 %v67, 0.0
    %v100 = vmax.f32 %v68, 0.0
    %v101 = vmax.f32 %v69, 0.0
    %v102 = vmax.f32 %v70, 0.0
    %v103 = vmax.f32 %v71, 0.0
    %v104 = vmax.f32 %v72, 0.0
    %v105 = vmax.f32 %v73, 0.0
    %v106 = vmax.f32 %v74, 0.0
    %v107 = vmax.f32 %v75, 0.0
    %v108 = vmax.f32 %v76, 0.0
    %v109 = vmax.f32 %v77, 0.0
    %v110 = vmax.f32 %v78, 0.0
    %v111 = vmax.f32 %v79, 0.0
    %v112 = vmax.f32 %v80, 0.0
    %v113 = vmul.f32 %v65, %v81
    %v114 = vmul.f32 %v66, %v82
    %v115 = vmul.f32 %v67, %v83
    %v116 = vmul.f32 %v68, %v84
    %v117 = vmul.f32 %v69, %v85
    %v118 = vmul.f32 %v70, %v86
    %v119 = vmul.f32 %v71, %v87
    %v120 = vmul.f32 %v72, %v88
    %v121 = vmul.f32 %v73, %v89
    %v122 = vmul.f32 %v74, %v90
    %v123 = vmul.f32 %v75, %v91
    %v124 = vmul.f32 %v76, %v92
    %v125 = vmul.f32 %v77, %v93
    %v126 = vmul.f32 %v78, %v94
    %v127 = vmul.f32 %v79, %v95
    %v128 = vmul.f32 %v80, %v96
    %v129 = vsub.f32 %v97, %v113
    %v130 = vsub.f32 %v98, %v114
    %v131 = vsub.f32 %v99, %v115
    %v132 = vsub.f32 %v100, %v116
    %v133 = vsub.f32 %v101, %v117
    %v134 = vsub.f32 %v102, %v118
    %v135 = vsub.f32 %v103, %v119
    %v136 = vsub.f32 %v104, %v120
    %v137 = vsub.f32 %v105, %v121
    %v138 = vsub.f32 %v106, %v122
    %v139 = vsub.f32 %v107, %v123
    %v140 = vsub.f32 %v108, %v124
    %v141 = vsub.f32 %v109, %v125
    %v142 = vsub.f32 %v110, %v126
    %v143 = vsub.f32 %v111, %v127
    %v144 = vsub.f32 %v112, %v128
    %v145 = vand.u32 2147483647, %v65
    %v146 = vand.u32 2147483647, %v66
    %v147 = vand.u32 2147483647, %v67
    %v148 = vand.u32 2147483647, %v68
    %v149 = vand.u32 2147483647, %v69
    %v150 = vand.u32 2147483647, %v70
    %v151 = vand.u32 2147483647, %v71
    %v152 = vand.u32 2147483647, %v72
    %v153 = vand.u32 2147483647, %v73
    %v154 = vand.u32 2147483647, %v74
    %v155 = vand.u32 2147483647, %v75
    %v156 = vand.u32 2147483647, %v76
    %v157 = vand.u32 2147483647, %v77
    %v158 = vand.u32 2147483647, %v78
    %v159 = vand.u32 2147483647, %v79
    %v160 = vand.u32 2147483647, %v80
    %v161 = vsub.f32 0.0, %v145
    %v162 = vsub.f32 0.0, %v146
    %v163 = vsub.f32 0.0, %v147
    %v164 = vsub.f32 0.0, %v148
    %v165 = vsub.f32 0.0, %v149
    %v166 = vsub.f32 0.0, %v150
    %v167 = vsub.f32 0.0, %v151
    %v168 = vsub.f32 0.0, %v152
    %v169 = vsub.f32 0.0, %v153
    %v170 = vsub.f32 0.0, %v154
    %v171 = vsub.f32 0.0, %v155
    %v172 = vsub.f32 0.0, %v156
    %v173 = vsub.f32 0.0, %v157
    %v174 = vsub.f32 0.0, %v158
    %v175 = vsub.f32 0.0, %v159
    %v176 = vsub.f32 0.0, %v160
    %v177 = vmul.f32 %v161, 1.442695
    %v178 = vpow.pop %v177
    %v179 = vmul.f32 %v162, 1.442695
    %v180 = vpow.pop %v179
    %v181 = vmul.f32 %v163, 1.442695
    %v182 = vpow.pop %v181
    %v183 = vmul.f32 %v164, 1.442695
    %v184 = vpow.pop %v183
    %v185 = vmul.f32 %v165, 1.442695
    %v186 = vpow.pop %v185
    %v187 = vmul.f32 %v166, 1.442695
    %v188 = vpow.pop %v187
    %v189 = vmul.f32 %v167, 1.442695
    %v190 = vpow.pop %v189
    %v191 = vmul.f32 %v168, 1.442695
    %v192 = vpow.pop %v191
    %v193 = vmul.f32 %v169, 1.442695
    %v194 = vpow.pop %v193
    %v195 = vmul.f32 %v170, 1.442695
    %v196 = vpow.pop %v195
    %v197 = vmul.f32 %v171, 1.442695
    %v198 = vpow.pop %v197
    %v199 = vmul.f32 %v172, 1.442695
    %v200 = vpow.pop %v199
    %v201 = vmul.f32 %v173, 1.442695
    %v202 = vpow.pop %v201
    %v203 = vmul.f32 %v174, 1.442695
    %v204 = vpow.pop %v203
    %v205 = vmul.f32 %v175, 1.442695
    %v206 = vpow.pop %v205
    %v207 = vmul.f32 %v176, 1.442695
    %v208 = vpow.pop %v207
    %v209 = vadd.f32 %v178, 1.0
    %v210 = vlog2.pop %v209
    %v211 = vmul.f32 %v210, 0.6931472
    %v212 = vmul.f32 -0.5, %v178
    %v213 = vadd.f32 %v212, 1.0
    %v214 = vmul.f32 %v213, %v178
    %v215 = vand.u32 2147483647, %v178
    %vm216 = vcmp.lt.f32.partialorder %v215, 0.0004427343
    %v217 = vsel %vm216, %v214, %v211
    %v218 = vadd.f32 %v180, 1.0
    %v219 = vlog2.pop %v218
    %v220 = vmul.f32 %v219, 0.6931472
    %v221 = vmul.f32 -0.5, %v180
    %v222 = vadd.f32 %v221, 1.0
    %v223 = vmul.f32 %v222, %v180
    %v224 = vand.u32 2147483647, %v180
    %vm225 = vcmp.lt.f32.partialorder %v224, 0.0004427343
    %v226 = vsel %vm225, %v223, %v220
    %v227 = vadd.f32 %v182, 1.0
    %v228 = vlog2.pop %v227
    %v229 = vmul.f32 %v228, 0.6931472
    %v230 = vmul.f32 -0.5, %v182
    %v231 = vadd.f32 %v230, 1.0
    %v232 = vmul.f32 %v231, %v182
    %v233 = vand.u32 2147483647, %v182
    %vm234 = vcmp.lt.f32.partialorder %v233, 0.0004427343
    %v235 = vsel %vm234, %v232, %v229
    %v236 = vadd.f32 %v184, 1.0
    %v237 = vlog2.pop %v236
    %v238 = vmul.f32 %v237, 0.6931472
    %v239 = vmul.f32 -0.5, %v184
    %v240 = vadd.f32 %v239, 1.0
    %v241 = vmul.f32 %v240, %v184
    %v242 = vand.u32 2147483647, %v184
    %vm243 = vcmp.lt.f32.partialorder %v242, 0.0004427343
    %v244 = vsel %vm243, %v241, %v238
    %v245 = vadd.f32 %v186, 1.0
    %v246 = vlog2.pop %v245
    %v247 = vmul.f32 %v246, 0.6931472
    %v248 = vmul.f32 -0.5, %v186
    %v249 = vadd.f32 %v248, 1.0
    %v250 = vmul.f32 %v249, %v186
    %v251 = vand.u32 2147483647, %v186
    %vm252 = vcmp.lt.f32.partialorder %v251, 0.0004427343
    %v253 = vsel %vm252, %v250, %v247
    %v254 = vadd.f32 %v188, 1.0
    %v255 = vlog2.pop %v254
    %v256 = vmul.f32 %v255, 0.6931472
    %v257 = vmul.f32 -0.5, %v188
    %v258 = vadd.f32 %v257, 1.0
    %v259 = vmul.f32 %v258, %v188
    %v260 = vand.u32 2147483647, %v188
    %vm261 = vcmp.lt.f32.partialorder %v260, 0.0004427343
    %v262 = vsel %vm261, %v259, %v256
    %v263 = vadd.f32 %v190, 1.0
    %v264 = vlog2.pop %v263
    %v265 = vmul.f32 %v264, 0.6931472
    %v266 = vmul.f32 -0.5, %v190
    %v267 = vadd.f32 %v266, 1.0
    %v268 = vmul.f32 %v267, %v190
    %v269 = vand.u32 2147483647, %v190
    %vm270 = vcmp.lt.f32.partialorder %v269, 0.0004427343
    %v271 = vsel %vm270, %v268, %v265
    %v272 = vadd.f32 %v192, 1.0
    %v273 = vlog2.pop %v272
    %v274 = vmul.f32 %v273, 0.6931472
    %v275 = vmul.f32 -0.5, %v192
    %v276 = vadd.f32 %v275, 1.0
    %v277 = vmul.f32 %v276, %v192
    %v278 = vand.u32 2147483647, %v192
    %vm279 = vcmp.lt.f32.partialorder %v278, 0.0004427343
    %v280 = vsel %vm279, %v277, %v274
    %v281 = vadd.f32 %v194, 1.0
    %v282 = vlog2.pop %v281
    %v283 = vmul.f32 %v282, 0.6931472
    %v284 = vmul.f32 -0.5, %v194
    %v285 = vadd.f32 %v284, 1.0
    %v286 = vmul.f32 %v285, %v194
    %v287 = vand.u32 2147483647, %v194
    %vm288 = vcmp.lt.f32.partialorder %v287, 0.0004427343
    %v289 = vsel %vm288, %v286, %v283
    %v290 = vadd.f32 %v196, 1.0
    %v291 = vlog2.pop %v290
    %v292 = vmul.f32 %v291, 0.6931472
    %v293 = vmul.f32 -0.5, %v196
    %v294 = vadd.f32 %v293, 1.0
    %v295 = vmul.f32 %v294, %v196
    %v296 = vand.u32 2147483647, %v196
    %vm297 = vcmp.lt.f32.partialorder %v296, 0.0004427343
    %v298 = vsel %vm297, %v295, %v292
    %v299 = vadd.f32 %v198, 1.0
    %v300 = vlog2.pop %v299
    %v301 = vmul.f32 %v300, 0.6931472
    %v302 = vmul.f32 -0.5, %v198
    %v303 = vadd.f32 %v302, 1.0
    %v304 = vmul.f32 %v303, %v198
    %v305 = vand.u32 2147483647, %v198
    %vm306 = vcmp.lt.f32.partialorder %v305, 0.0004427343
    %v307 = vsel %vm306, %v304, %v301
    %v308 = vadd.f32 %v200, 1.0
    %v309 = vlog2.pop %v308
    %v310 = vmul.f32 %v309, 0.6931472
    %v311 = vmul.f32 -0.5, %v200
    %v312 = vadd.f32 %v311, 1.0
    %v313 = vmul.f32 %v312, %v200
    %v314 = vand.u32 2147483647, %v200
    %vm315 = vcmp.lt.f32.partialorder %v314, 0.0004427343
    %v316 = vsel %vm315, %v313, %v310
    %v317 = vadd.f32 %v202, 1.0
    %v318 = vlog2.pop %v317
    %v319 = vmul.f32 %v318, 0.6931472
    %v320 = vmul.f32 -0.5, %v202
    %v321 = vadd.f32 %v320, 1.0
    %v322 = vmul.f32 %v321, %v202
    %v323 = vand.u32 2147483647, %v202
    %vm324 = vcmp.lt.f32.partialorder %v323, 0.0004427343
    %v325 = vsel %vm324, %v322, %v319
    %v326 = vadd.f32 %v204, 1.0
    %v327 = vlog2.pop %v326
    %v328 = vmul.f32 %v327, 0.6931472
    %v329 = vmul.f32 -0.5, %v204
    %v330 = vadd.f32 %v329, 1.0
    %v331 = vmul.f32 %v330, %v204
    %v332 = vand.u32 2147483647, %v204
    %vm333 = vcmp.lt.f32.partialorder %v332, 0.0004427343
    %v334 = vsel %vm333, %v331, %v328
    %v335 = vadd.f32 %v206, 1.0
    %v336 = vlog2.pop %v335
    %v337 = vmul.f32 %v336, 0.6931472
    %v338 = vmul.f32 -0.5, %v206
    %v339 = vadd.f32 %v338, 1.0
    %v340 = vmul.f32 %v339, %v206
    %v341 = vand.u32 2147483647, %v206
    %vm342 = vcmp.lt.f32.partialorder %v341, 0.0004427343
    %v343 = vsel %vm342, %v340, %v337
    %v344 = vadd.f32 %v208, 1.0
    %v345 = vlog2.pop %v344
    %v346 = vmul.f32 %v345, 0.6931472
    %v347 = vmul.f32 -0.5, %v208
    %v348 = vadd.f32 %v347, 1.0
    %v349 = vmul.f32 %v348, %v208
    %v350 = vand.u32 2147483647, %v208
    %vm351 = vcmp.lt.f32.partialorder %v350, 0.0004427343
    %v352 = vsel %vm351, %v349, %v346
    %v353 = vadd.f32 %v129, %v217
    %v354 = vadd.f32 %v130, %v226
    %v355 = vadd.f32 %v131, %v235
    %v356 = vadd.f32 %v132, %v244
    %v357 = vadd.f32 %v133, %v253
    %v358 = vadd.f32 %v134, %v262
    %v359 = vadd.f32 %v135, %v271
    %v360 = vadd.f32 %v136, %v280
    %v361 = vadd.f32 %v137, %v289
    %v362 = vadd.f32 %v138, %v298
    %v363 = vadd.f32 %v139, %v307
    %v364 = vadd.f32 %v140, %v316
    %v365 = vadd.f32 %v141, %v325
    %v366 = vadd.f32 %v142, %v334
    %v367 = vadd.f32 %v143, %v343
    %v368 = vadd.f32 %v144, %v352
    %369 = vst [vmem:[#allocation7] sm:$0xff] %v353
    %370 = vst [vmem:[#allocation7 + $0x8] sm:$0xff] %v354
    %371 = vst [vmem:[#allocation7 + $0x10] sm:$0xff] %v355
    %372 = vst [vmem:[#allocation7 + $0x18] sm:$0xff] %v356
    %373 = vst [vmem:[#allocation7 + $0x20] sm:$0xff] %v357
    %374 = vst [vmem:[#allocation7 + $0x28] sm:$0xff] %v358
    %375 = vst [vmem:[#allocation7 + $0x30] sm:$0xff] %v359
    %376 = vst [vmem:[#allocation7 + $0x38] sm:$0xff] %v360
    %377 = vst [vmem:[#allocation7 + $0x40] sm:$0xff] %v361
    %378 = vst [vmem:[#allocation7 + $0x48] sm:$0xff] %v362
    %379 = vst [vmem:[#allocation7 + $0x50] sm:$0xff] %v363
    %380 = vst [vmem:[#allocation7 + $0x58] sm:$0xff] %v364
    %381 = vst [vmem:[#allocation7 + $0x60] sm:$0xff] %v365
    %382 = vst [vmem:[#allocation7 + $0x68] sm:$0xff] %v366
    %383 = vst [vmem:[#allocation7 + $0x70] sm:$0xff] %v367
    %384 = vst [vmem:[#allocation7 + $0x78] sm:$0xff] %v368
    %v385 = vld [vmem:[#allocation8] sm:$0xff]
    %v386 = vld [vmem:[#allocation8 + $0x8] sm:$0xff]
    %v387 = vld [vmem:[#allocation8 + $0x10] sm:$0xff]
    %v388 = vld [vmem:[#allocation8 + $0x18] sm:$0xff]
    %v389 = vadd.f32 %v353, %v357
    %v390 = vadd.f32 %v389, %v361
    %v391 = vadd.f32 %v390, %v365
    %v392 = vadd.f32 %v354, %v358
    %v393 = vadd.f32 %v392, %v362
    %v394 = vadd.f32 %v393, %v366
    %v395 = vadd.f32 %v355, %v359
    %v396 = vadd.f32 %v395, %v363
    %v397 = vadd.f32 %v396, %v367
    %v398 = vadd.f32 %v356, %v360
    %v399 = vadd.f32 %v398, %v364
    %v400 = vadd.f32 %v399, %v368
    %v401 = vadd.f32 %v385, %v391
    %v402 = vadd.f32 %v386, %v394
    %v403 = vadd.f32 %v387, %v397
    %v404 = vadd.f32 %v388, %v400
    %405 = vst [vmem:[#allocation8] sm:$0xff] %v401
    %406 = vst [vmem:[#allocation8 + $0x8] sm:$0xff] %v402
    %407 = vst [vmem:[#allocation8 + $0x10] sm:$0xff] %v403
    %408 = vst [vmem:[#allocation8 + $0x18] sm:$0xff] %v404
    // Predicated region
    $region22: #{tpu_custom_call.1} parent=1 // pred_check
      _
    $region23: #{tpu_custom_call.1} parent=1 // pred_check_branch
      %410 = sbr.rel (0) target = $region25
    $region24: #{tpu_custom_call.1} parent=1 // pred_region
      %s411 = sadd.s32 0, 0
      %s412 = smul.u32 16, %s411
      %s414 = ssub.s32 2048, 2048
      %415 = vsyncadd [#allocation4], %s414
      %s416 = smul.addr %s412, 128
      %s417 = scalar_lea.hbm %s2, %s416
      %s418 = sshll.u32 [#allocation7], 4
      %s419 = int_to_ptr.vmem [resolvable:$true] %s418
      %424 = dma.vmem_to_hbm [thread:$0]  %s419, 2048, %s417, [#allocation4], 128, 128, 8
    $region25: #{tpu_custom_call.1} parent=1 // pred_fallthru
      _
    // Predicated region
    $region26: #{tpu_custom_call.1} parent=1 // pred_check
      _
    $region27: #{tpu_custom_call.1} parent=1 // pred_check_branch
      %426 = sbr.rel (0) target = $region29
    $region28: #{tpu_custom_call.1} parent=1 // pred_region
      %s428 = ssub.s32 512, 512
      %429 = vsyncadd [#allocation9], %s428
      %s430 = sshll.u32 [#allocation8], 4
      %s431 = int_to_ptr.vmem [resolvable:$true] %s430
      %436 = dma.vmem_to_hbm [thread:$0]  %s431, 512, %s3, [#allocation9], 128, 128, 8
    $region29: #{tpu_custom_call.1} parent=1 // pred_fallthru
      _
    // Predicated region
    $region30: #{tpu_custom_call.1} parent=1 // pred_check
      _
    $region31: #{tpu_custom_call.1} parent=1 // pred_check_branch
      %438 = sbr.rel (0) target = $region33
    $region32: #{tpu_custom_call.1} parent=1 // pred_region
      %439 = dma.done [#allocation4], 2048
    $region33: #{tpu_custom_call.1} parent=1 // pred_fallthru
      _
    // Predicated region
    $region34: #{tpu_custom_call.1} parent=1 // pred_check
      _
    $region35: #{tpu_custom_call.1} parent=1 // pred_check_branch
      %441 = sbr.rel (0) target = $region37
    $region36: #{tpu_custom_call.1} parent=1 // pred_region
      %442 = dma.done [#allocation9], 512
    $region37: #{tpu_custom_call.1} parent=1 // pred_fallthru
      _
    %443 = vsyncpa [#allocation3], 1
    %444 = vsyncpa [#allocation6], 1
    %445 = vsyncpa [#allocation4], 1
    %446 = vsyncpa [#allocation9], 1

</llo_original>
